<compile_context>
chip_gen: v7x
topology: tpu7x:2x2x1
jax: 0.10.0
libtpu: 0.0.40
codegen_flags: <defaults>
</compile_context>

<pallas_src>
import functools

import jax
import jax.numpy as jnp
from jax.experimental import pallas as pl
from jax.experimental.pallas import tpu as pltpu

_LANE = 128
_SUBLANE = 8
_FLAT_COLS = 512                        # lane-dense view width for the flat path
_TARGET_BLOCK_BYTES = 2 * 1024 * 1024   # per-input, per-pipeline-buffer byte budget
_MAX_COL_BYTES = _TARGET_BLOCK_BYTES // _SUBLANE  # 2-D path only if one row fits this
_VMEM_LIMIT_BYTES = 32 * 1024 * 1024    # explicit: v5e scoped default is only 16 MiB


def _round_up(x, m):
    return ((x + m - 1) // m) * m


def _smape_terms(forecast_ref, target_ref, mask_ref):
    """Per-element divide_no_nan(|f-t|, |f|+|t|) * mask, widened to f32 in-kernel."""
    f = forecast_ref[...].astype(jnp.float32)
    t = target_ref[...].astype(jnp.float32)
    m = mask_ref[...].astype(jnp.float32)
    num = jnp.abs(f - t)
    den = jnp.abs(f) + jnp.abs(t)
    # torch.divide_no_nan zeroes NaN and Inf results: since num, den >= 0 the ratio is
    # finite iff 0 < den < inf.  Exact division: the kernel is HBM-bound, so the VPU
    # divide is hidden under the DMA roofline and full f32 accuracy comes for free.
    valid = jnp.logical_and(den > 0.0, den < jnp.inf)
    ratio = jnp.where(valid, num / jnp.where(valid, den, 1.0), 0.0)
    return ratio * m


def _smape_flat_kernel(forecast_ref, target_ref, mask_ref, out_ref):
    # Flat path: the wrapper zero-pads to whole blocks and zero padding contributes
    # exactly 0 (den == 0 and mask == 0), so no in-kernel masking is needed.
    out_ref[0, 0] = jnp.sum(_smape_terms(forecast_ref, target_ref, mask_ref))


def _smape_2d_kernel(forecast_ref, target_ref, mask_ref, out_ref, *,
                     block_rows, total_rows):
    contrib = _smape_terms(forecast_ref, target_ref, mask_ref)
    if total_rows % block_rows == 0:          # static: no ragged block at all
        out_ref[0, 0] = jnp.sum(contrib)
    else:
        # Only the last block is ragged; full blocks skip the masking entirely.
        i = pl.program_id(0)
        last = pl.num_programs(0) - 1

        @pl.when(i < last)
        def _():
            out_ref[0, 0] = jnp.sum(contrib)

        @pl.when(i == last)
        def _():
            row = (jax.lax.broadcasted_iota(jnp.int32, (block_rows, 1), 0)
                   + i * block_rows)
            out_ref[0, 0] = jnp.sum(jnp.where(row < total_rows, contrib, 0.0))


def _choose_block_rows(total_rows, row_bytes):
    """Rows per block: ~_TARGET_BLOCK_BYTES per input pipeline buffer, a multiple of 8
    sublanes, and >= 2 blocks whenever possible so the "parallel" grid axis can be
    sharded across both v7x TensorCores."""
    if total_rows <= _SUBLANE:
        return total_rows                     # full extent, single block
    tb = max(_SUBLANE, (_TARGET_BLOCK_BYTES // row_bytes) // _SUBLANE * _SUBLANE)
    if tb >= total_rows:
        # Split into (at least) two blocks so both v7x TensorCores get work.
        tb = max(_SUBLANE, _round_up(pl.cdiv(total_rows, 2), _SUBLANE))
    return tb


def smape_loss(insample, freq, forecast, target, mask):
    """Pallas implementation of smape_loss.forward.

    insample / freq are accepted for signature parity but unused (as in the PyTorch
    module).  forecast, target, mask: shape (batch, time).  Returns a scalar f32 loss.
    """
    del insample, freq  # unused, exactly as in the reference forward
    assert forecast.shape == target.shape == mask.shape
    assert forecast.ndim == 2, "expected (batch, time) inputs"
    batch, time = forecast.shape
    n_elems = batch * time

    itemsize = max(jnp.dtype(a.dtype).itemsize for a in (forecast, target, mask))

    # T already a lane multiple and one row fits the block budget -> stream the (B, T)
    # layout directly (no relayout).  Otherwise flatten to a lane-dense (rows, 512)
    # view, which removes padded-lane HBM traffic for small / odd T and keeps huge-T
    # shapes within VMEM.
    # TODO(synk): produce the flattened layout upstream so the relayout copy is free.
    lane_dense_2d = (time % _LANE == 0) and (time * itemsize <= _MAX_COL_BYTES)

    if lane_dense_2d:
        rows, cols = batch, time
        tb = _choose_block_rows(rows, cols * itemsize)
        num_blocks = pl.cdiv(rows, tb)
        inputs = (forecast, target, mask)
        kernel = functools.partial(_smape_2d_kernel, block_rows=tb, total_rows=rows)
    else:
        cols = _FLAT_COLS
        rows = pl.cdiv(n_elems, cols)
        tb = _choose_block_rows(rows, cols * itemsize)
        num_blocks = pl.cdiv(rows, tb)
        padded_elems = num_blocks * tb * cols

        def _flat(x):
            x = jnp.reshape(x, (-1,))
            x = jnp.pad(x, (0, padded_elems - n_elems))   # zeros -> contribute 0
            return jnp.reshape(x, (num_blocks * tb, cols))

        inputs = tuple(_flat(a) for a in (forecast, target, mask))
        kernel = _smape_flat_kernel

    in_bytes = sum(a.size * jnp.dtype(a.dtype).itemsize for a in inputs)

    partials = pl.pallas_call(
        kernel,
        out_shape=jax.ShapeDtypeStruct((num_blocks, 1), jnp.float32),
        grid=(num_blocks,),
        in_specs=[pl.BlockSpec((tb, cols), lambda i: (i, 0))] * 3,
        out_specs=pl.BlockSpec((1, 1), lambda i: (i, 0), memory_space=pltpu.SMEM),
        compiler_params=pltpu.CompilerParams(
            dimension_semantics=("parallel",),
            vmem_limit_bytes=_VMEM_LIMIT_BYTES,
        ),
        cost_estimate=pl.CostEstimate(
            flops=8 * n_elems,
            transcendentals=0,
            bytes_accessed=in_bytes + num_blocks * 4,
        ),
    )(*inputs)

    # Global mean over ALL (unpadded) elements, scaled by 200.
    return (200.0 / n_elems) * jnp.sum(partials)


def _reference(forecast, target, mask):
    num = jnp.abs(forecast - target)
    den = jnp.abs(forecast) + jnp.abs(target)
    valid = jnp.logical_and(den > 0.0, jnp.isfinite(den))
    r = jnp.where(valid, num / jnp.where(valid, den, 1.0), 0.0)
    return 200.0 * jnp.mean(r * mask)


if __name__ == "__main__":
    key = jax.random.PRNGKey(0)
    ks = jax.random.split(key, 8)
    freq = 1

    # Primary example (small shapes, odd T -> lane-dense flat path).
    batch, time = 2, 8
    insample = jax.random.normal(ks[0], (batch, time), dtype=jnp.float32)
    forecast = jax.random.normal(ks[1], (batch, time), dtype=jnp.float32)
    target = jax.random.normal(ks[2], (batch, time), dtype=jnp.float32)
    mask = (jax.random.uniform(ks[3], (batch, time)) > 0.3).astype(jnp.float32)
    # Force a 0/0 element to exercise divide_no_nan.
    forecast = forecast.at[0, 0].set(0.0)
    target = target.at[0, 0].set(0.0)

    loss = jax.block_until_ready(smape_loss(insample, freq, forecast, target, mask))
    ref = _reference(forecast, target, mask)
    assert jnp.allclose(loss, ref, rtol=1e-5, atol=1e-6), (loss, ref)

    # Secondary check: T a multiple of 128 -> direct 2-D path with a ragged last block.
    b2, t2 = 10, 128
    in2 = jax.random.normal(ks[4], (b2, t2), dtype=jnp.float32)
    f2 = jax.random.normal(ks[5], (b2, t2), dtype=jnp.float32)
    tg2 = jax.random.normal(ks[6], (b2, t2), dtype=jnp.float32)
    m2 = (jax.random.uniform(ks[7], (b2, t2)) > 0.5).astype(jnp.float32)
    loss2 = jax.block_until_ready(smape_loss(in2, freq, f2, tg2, m2))
    ref2 = _reference(f2, tg2, m2)
    assert jnp.allclose(loss2, ref2, rtol=1e-5, atol=1e-6), (loss2, ref2)

    print("KERNEL_OK")
</pallas_src>

<mosaic_0001>
module attributes {stable_mosaic.version = 11 : i64} {
  func.func @_smape_flat_kernel(%arg0: i32, %arg1: memref<1x512xf32, #tpu.memory_space<vmem>>, %arg2: memref<1x512xf32, #tpu.memory_space<vmem>>, %arg3: memref<1x512xf32, #tpu.memory_space<vmem>>, %arg4: memref<1x1xf32, #tpu.memory_space<smem>>) attributes {dimension_semantics = [#tpu.dimension_semantics<parallel>], iteration_bounds = array<i64: 1>, scalar_prefetch = 0 : i64, scratch_operands = 0 : i64, tpu.core_type = #tpu.core_type<tc>, window_params = [{transform_indices = @transform_0, window_bounds = array<i64: 1, 512>}, {transform_indices = @transform_1, window_bounds = array<i64: 1, 512>}, {transform_indices = @transform_2, window_bounds = array<i64: 1, 512>}, {transform_indices = @transform_3, window_bounds = array<i64: 1, 1>}]} {
    %c0 = arith.constant 0 : index
    %c0_0 = arith.constant 0 : index
    %0 = vector.load %arg1[%c0, %c0_0] : memref<1x512xf32, #tpu.memory_space<vmem>>, vector<1x512xf32>
    %c0_1 = arith.constant 0 : index
    %c0_2 = arith.constant 0 : index
    %1 = vector.load %arg2[%c0_1, %c0_2] : memref<1x512xf32, #tpu.memory_space<vmem>>, vector<1x512xf32>
    %c0_3 = arith.constant 0 : index
    %c0_4 = arith.constant 0 : index
    %2 = vector.load %arg3[%c0_3, %c0_4] : memref<1x512xf32, #tpu.memory_space<vmem>>, vector<1x512xf32>
    %3 = arith.subf %0, %1 : vector<1x512xf32>
    %4 = math.absf %3 : vector<1x512xf32>
    %5 = math.absf %0 : vector<1x512xf32>
    %6 = math.absf %1 : vector<1x512xf32>
    %7 = arith.addf %5, %6 : vector<1x512xf32>
    %cst = arith.constant 0.000000e+00 : f32
    %8 = vector.broadcast %cst : f32 to vector<1x512xf32>
    %9 = arith.cmpf ogt, %7, %8 : vector<1x512xf32>
    %cst_5 = arith.constant 0x7F800000 : f32
    %10 = vector.broadcast %cst_5 : f32 to vector<1x512xf32>
    %11 = arith.cmpf olt, %7, %10 : vector<1x512xf32>
    %12 = arith.andi %9, %11 : vector<1x512xi1>
    %cst_6 = arith.constant 1.000000e+00 : f32
    %13 = vector.broadcast %cst_6 : f32 to vector<1x512xf32>
    %14 = arith.select %12, %7, %13 : vector<1x512xi1>, vector<1x512xf32>
    %15 = arith.divf %4, %14 : vector<1x512xf32>
    %cst_7 = arith.constant 0.000000e+00 : f32
    %16 = vector.broadcast %cst_7 : f32 to vector<1x512xf32>
    %17 = arith.select %12, %15, %16 : vector<1x512xi1>, vector<1x512xf32>
    %18 = arith.mulf %17, %2 : vector<1x512xf32>
    %19 = vector.shape_cast %18 : vector<1x512xf32> to vector<1x1x512xf32>
    %cst_8 = arith.constant dense<0.000000e+00> : vector<1xf32>
    %20 = vector.multi_reduction <add>, %19, %cst_8 [1, 2] : vector<1x1x512xf32> to vector<1xf32>
    %21 = vector.shape_cast %20 : vector<1xf32> to vector<1x1x1xf32>
    %22 = vector.extract %21[0, 0, 0] : f32 from vector<1x1x1xf32>
    %c0_9 = arith.constant 0 : index
    %c0_10 = arith.constant 0 : index
    %23 = memref.load %arg4[%c0_9, %c0_10] : memref<1x1xf32, #tpu.memory_space<smem>>
    memref.store %22, %arg4[%c0_9, %c0_10] : memref<1x1xf32, #tpu.memory_space<smem>>
    return
  }
  func.func @transform_0(%arg0: i32) -> (i32, i32) {
    %c0_i32 = arith.constant 0 : i32
    %c0_i32_0 = arith.constant 0 : i32
    return %arg0, %c0_i32 : i32, i32
  }
  func.func @transform_1(%arg0: i32) -> (i32, i32) {
    %c0_i32 = arith.constant 0 : i32
    %c0_i32_0 = arith.constant 0 : i32
    return %arg0, %c0_i32 : i32, i32
  }
  func.func @transform_2(%arg0: i32) -> (i32, i32) {
    %c0_i32 = arith.constant 0 : i32
    %c0_i32_0 = arith.constant 0 : i32
    return %arg0, %c0_i32 : i32, i32
  }
  func.func @transform_3(%arg0: i32) -> (i32, i32) {
    %c0_i32 = arith.constant 0 : i32
    %c0_i32_0 = arith.constant 0 : i32
    return %arg0, %c0_i32 : i32, i32
  }
}

</mosaic_0001>

<llo_original>
// kernel: tpu_custom_call.1
$region0: #{tpu_custom_call.1}
  #allocation0 [shape = 'u32[]', space=smem, size = 0x4, offset = 0x4, fixed_abs, tag = 'smem constant byte address 0x4 - core index']
  #allocation1 [shape = 'u32[144,128]{1,0:T(1,128)}', space=vmem, size = 0x12000, scoped, tag = 'internal scratch']
  %s0 = inlined_call_operand.hbm [shape: f32[1,512], index: 0, kind: input, shape index: {}]
  %s1 = inlined_call_operand.hbm [shape: f32[1,512], index: 1, kind: input, shape index: {}]
  %s2 = inlined_call_operand.vmem [shape: f32[1,512], index: 2, kind: input, shape index: {}]
  %s3 = inlined_call_operand.hbm [shape: f32[1,1], index: 3, kind: output, shape index: {}]
  %s4 = sld [smem:[#allocation0]]
  $region30: #{tpu_custom_call.1} parent=0
    _
  %s6 = ssub.s32 1, %s4
  %s7 = scalar_select 0, %s6, %s4
  $region1: #{tpu_custom_call.1} parent=0
    #allocation2 [shape = 'u8[2048]{0}', space=vmem, size = 0x800, scoped, tag = 'input window, operand 0, single buffered']
    #allocation3 [shape = 's32[1]{0}', space=sflag, size = 0x4, scoped, tag = 'scoped memory for tpu_custom_call.1']
    #allocation4 [shape = 's32[1]{0}', space=sflag, size = 0x4, scoped, tag = 'scoped memory for tpu_custom_call.1']
    #allocation5 [shape = 'u8[2048]{0}', space=vmem, size = 0x800, scoped, tag = 'input window, operand 1, single buffered']
    #allocation6 [shape = 's32[1]{0}', space=sflag, size = 0x4, scoped, tag = 'scoped memory for tpu_custom_call.1']
    #allocation7 [shape = 'u8[512]{0}', space=smem, size = 0x200, scoped, tag = 'output window, operand 0, single buffered']
    %8 = vsyncpa [#allocation3], 0
    %9 = vsyncpa [#allocation6], 0
    %10 = vsyncpa [#allocation4], 0
    // Predicated region
    $region2: #{tpu_custom_call.1} parent=1 // pred_check
      _
    $region3: #{tpu_custom_call.1} parent=1 // pred_check_branch
      %12 = sbr.rel (0) target = $region5
    $region4: #{tpu_custom_call.1} parent=1 // pred_region
      %s14 = ssub.s32 64, 64
      %15 = vsyncadd [#allocation3], %s14
      %s17 = sshll.u32 [#allocation2], 4
      %s18 = int_to_ptr.vmem [resolvable:$true] %s17
      %20 = dma.hbm_to_vmem [thread:$0]  %s0, 64, %s18, [#allocation3]
    $region5: #{tpu_custom_call.1} parent=1 // pred_fallthru
      _
    // Predicated region
    $region6: #{tpu_custom_call.1} parent=1 // pred_check
      _
    $region7: #{tpu_custom_call.1} parent=1 // pred_check_branch
      %22 = sbr.rel (0) target = $region9
    $region8: #{tpu_custom_call.1} parent=1 // pred_region
      %s24 = ssub.s32 64, 64
      %25 = vsyncadd [#allocation6], %s24
      %s27 = sshll.u32 [#allocation5], 4
      %s28 = int_to_ptr.vmem [resolvable:$true] %s27
      %30 = dma.hbm_to_vmem [thread:$0]  %s1, 64, %s28, [#allocation6]
    $region9: #{tpu_custom_call.1} parent=1 // pred_fallthru
      _
    // Predicated region
    $region10: #{tpu_custom_call.1} parent=1 // pred_check
      _
    $region11: #{tpu_custom_call.1} parent=1 // pred_check_branch
      %32 = sbr.rel (0) target = $region13
    $region12: #{tpu_custom_call.1} parent=1 // pred_region
      _
    $region13: #{tpu_custom_call.1} parent=1 // pred_fallthru
      _
    // Predicated region
    $region14: #{tpu_custom_call.1} parent=1 // pred_check
      _
    $region15: #{tpu_custom_call.1} parent=1 // pred_check_branch
      %34 = sbr.rel (0) target = $region17
    $region16: #{tpu_custom_call.1} parent=1 // pred_region
      %35 = dma.done [#allocation3], 64
    $region17: #{tpu_custom_call.1} parent=1 // pred_fallthru
      _
    // Predicated region
    $region18: #{tpu_custom_call.1} parent=1 // pred_check
      _
    $region19: #{tpu_custom_call.1} parent=1 // pred_check_branch
      %37 = sbr.rel (0) target = $region21
    $region20: #{tpu_custom_call.1} parent=1 // pred_region
      %38 = dma.done [#allocation6], 64
    $region21: #{tpu_custom_call.1} parent=1 // pred_fallthru
      _
    %v39 = vld [vmem:[#allocation2] sm:$0xf]
    %v40 = vld [vmem:[#allocation5] sm:$0xf]
    %v41 = vld [vmem:[%s2] sm:$0xf]
    %v42 = vsub.f32 %v39, %v40
    %v43 = vand.u32 2147483647, %v42
    %v44 = vand.u32 2147483647, %v39
    %v45 = vand.u32 2147483647, %v40
    %v46 = vadd.f32 %v44, %v45
    %vm47 = vcmp.gt.f32.partialorder %v46, 0.0
    %vm48 = vcmp.lt.f32.partialorder %v46, inf
    %vm49 = vmand %vm47, %vm48
    %v50 = vsel %vm49, %v46, 1.0
    %v51 = vrcp.pop %v50
    %v52 = vmul.f32 %v43, %v51
    %v53 = vsel %vm49, %v52, 0.0
    %v54 = vmul.f32 %v53, %v41
    %v56 = vlaneseq
    %v57 = vshrl.u32 %v56, 7
    %v58 = vsub.s32 0, %v57
    %v59 = vrot.slane %v54, %v58
    %v60 = vlaneseq
    %v61 = vshrl.u32 %v60, 7
    %v62 = vsub.s32 1, %v61
    %v63 = vrot.slane %v54, %v62
    %v64 = vlaneseq
    %v65 = vshrl.u32 %v64, 7
    %v66 = vsub.s32 2, %v65
    %v67 = vrot.slane %v54, %v66
    %v68 = vlaneseq
    %v69 = vshrl.u32 %v68, 7
    %v70 = vsub.s32 3, %v69
    %v71 = vrot.slane %v54, %v70
    %vm76 = vcmask 1040384
    %v77 = vsel %vm76, %v59, 0.0
    %v78 = vsel %vm76, %v63, 0.0
    %v79 = vadd.f32 %v77, %v78
    %v80 = vsel %vm76, %v67, 0.0
    %v81 = vadd.f32 %v79, %v80
    %v82 = vsel %vm76, %v71, 0.0
    %v83 = vadd.f32 %v81, %v82
    %84 = vadd.xlane.f32.xlu0 %v83
    %v85 = vpop.xlane.xlu0 %84
    %v86 = vrot.slane %v85, 4
    %v87 = vadd.f32 %v85, %v86
    %v88 = vrot.slane %v87, 2
    %v89 = vadd.f32 %v87, %v88
    %v90 = vrot.slane %v89, 1
    %v91 = vadd.f32 %v89, %v90
    %s92 = vtos %v91
    %s93 = scalar_lea.smem [#allocation7], 0
    %94 = sst [smem:[%s93]] %s92
    // Predicated region
    $region22: #{tpu_custom_call.1} parent=1 // pred_check
      _
    $region23: #{tpu_custom_call.1} parent=1 // pred_check_branch
      %96 = sbr.rel (0) target = $region25
    $region24: #{tpu_custom_call.1} parent=1 // pred_region
      %s98 = ssub.s32 16, 16
      %99 = vsyncadd [#allocation4], %s98
      %102 = dma.smem_to_hbm [#allocation7], 16, %s3, [#allocation4]
    $region25: #{tpu_custom_call.1} parent=1 // pred_fallthru
      _
    // Predicated region
    $region26: #{tpu_custom_call.1} parent=1 // pred_check
      _
    $region27: #{tpu_custom_call.1} parent=1 // pred_check_branch
      %104 = sbr.rel (0) target = $region29
    $region28: #{tpu_custom_call.1} parent=1 // pred_region
      %105 = dma.done [#allocation4], 16
    $region29: #{tpu_custom_call.1} parent=1 // pred_fallthru
      _
    %106 = sfence
    %107 = vsyncpa [#allocation3], 1
    %108 = vsyncpa [#allocation6], 1
    %109 = vsyncpa [#allocation4], 1

</llo_original>
